<compile_context>
chip_gen: v7x
topology: tpu7x:2x2x1
jax: 0.10.0
libtpu: 0.0.40
codegen_flags: <defaults>
</compile_context>

<pallas_src>
import functools

import jax
import jax.numpy as jnp
from jax import lax
from jax.experimental import pallas as pl
from jax.experimental.pallas import tpu as pltpu

_LANES = 128
_SUBLANES = 8
_CHUNK = 64          # rows per inner fori_loop chunk (multiple of 8)


def _ccc_from_moments(s_x, s_y, s_xx, s_yy, s_xy, *, n, loss_weight):
    """CCC loss from the five raw-moment sums (f32 scalars). Usable both
    inside a kernel and in the wrapper."""
    # 1/n and 1/(n-1) computed host-side in double, then cast once -> avoids
    # the float32(n) rounding bias for n > 2^24.
    inv_n = jnp.float32(1.0 / n)
    inv_nm1 = jnp.float32(1.0 / (n - 1))
    x_m = s_x * inv_n
    y_m = s_y * inv_n
    # Centered moments from raw moments (s_x * x_m == n * x_m^2, one fewer
    # rounding); clamp at 0 against tiny negative cancellation residue.
    c_xx = jnp.maximum(s_xx - s_x * x_m, 0.0)
    c_yy = jnp.maximum(s_yy - s_y * y_m, 0.0)
    c_xy = s_xy - s_x * y_m
    # Pearson rho (matches torch: sum(vx*vy)/(sqrt(sum vx^2)*sqrt(sum vy^2)+eps))
    rho = c_xy / (jnp.sqrt(c_xx) * jnp.sqrt(c_yy) + 1e-10)
    # torch.std default is the unbiased estimator (divide by N-1)
    x_s = jnp.sqrt(c_xx * inv_nm1)
    y_s = jnp.sqrt(c_yy * inv_nm1)
    ccc = 2.0 * rho * x_s * y_s / (
        x_s * x_s + y_s * y_s + (x_m - y_m) ** 2 + 1e-10
    )
    return (1.0 - ccc) * jnp.float32(loss_weight)


# ---------------------------------------------------------------------------
# Small-n fast path: one full-array block, no grid loop, scalar SMEM output.
# ---------------------------------------------------------------------------
def _ccc_small_kernel(x_ref, y_ref, out_ref, *, n, loss_weight):
    x = x_ref[...].astype(jnp.float32)            # (1, n)
    y = y_ref[...].astype(jnp.float32)
    out_ref[0, 0] = _ccc_from_moments(
        jnp.sum(x), jnp.sum(y),
        jnp.sum(x * x), jnp.sum(y * y), jnp.sum(x * y),
        n=n, loss_weight=loss_weight)


def _ccc_loss_small(x_flat, y_flat, n, loss_weight):
    x2 = x_flat.reshape(1, n)                     # contiguous reshape: bitcast
    y2 = y_flat.reshape(1, n)
    kernel = functools.partial(_ccc_small_kernel, n=n, loss_weight=loss_weight)
    out = pl.pallas_call(
        kernel,
        out_shape=jax.ShapeDtypeStruct((1, 1), jnp.float32),
        grid_spec=pltpu.PrefetchScalarGridSpec(
            num_scalar_prefetch=0,
            grid=(1,),
            in_specs=[
                pl.BlockSpec((1, n), lambda i: (0, 0)),   # full dims -> exempt
                pl.BlockSpec((1, n), lambda i: (0, 0)),
            ],
            out_specs=pl.BlockSpec(
                (1, 1), lambda i: (0, 0),
                memory_space=pltpu.MemorySpace.SMEM,
            ),
        ),
        compiler_params=pltpu.CompilerParams(
            dimension_semantics=("arbitrary",),
        ),
    )(x2, y2)
    return out[0, 0]


# ---------------------------------------------------------------------------
# Large-n tiled path: per-split (5,8,128) raw-moment partials, finalize outside.
# ---------------------------------------------------------------------------
def _ccc_moments_kernel(x_ref, y_ref, out_ref, *, chunk):
    step = pl.program_id(1)

    @pl.when(step == 0)
    def _init():
        out_ref[...] = jnp.zeros_like(out_ref)

    tile_m = x_ref.shape[0]
    nchunks = tile_m // chunk
    sub = chunk // _SUBLANES

    def body(c, carry):
        sx, sy, sxx, syy, sxy = carry
        off = pl.multiple_of(c * chunk, chunk)
        # Chunked loads keep live vregs small: no whole-tile f32 temporaries
        # get staged through VMEM; sums over the leading (non-minor) axis are
        # pure VPU adds.
        xc = x_ref[pl.ds(off, chunk), :].astype(jnp.float32)
        yc = y_ref[pl.ds(off, chunk), :].astype(jnp.float32)
        xr = xc.reshape(sub, _SUBLANES, _LANES)
        yr = yc.reshape(sub, _SUBLANES, _LANES)
        return (sx + jnp.sum(xr, axis=0),
                sy + jnp.sum(yr, axis=0),
                sxx + jnp.sum(xr * xr, axis=0),
                syy + jnp.sum(yr * yr, axis=0),
                sxy + jnp.sum(xr * yr, axis=0))

    zero = jnp.zeros((_SUBLANES, _LANES), jnp.float32)
    sx, sy, sxx, syy, sxy = lax.fori_loop(
        0, nchunks, body, (zero, zero, zero, zero, zero),
        unroll=nchunks <= 32)

    # Single accumulator update per grid step.
    out_ref[0] += sx
    out_ref[1] += sy
    out_ref[2] += sxx
    out_ref[3] += syy
    out_ref[4] += sxy


def _ccc_loss_tiled(x_flat, y_flat, n, loss_weight, tile_rows):
    rows = -(-n // _LANES)                                # cdiv(n, 128)
    # tile_m: multiple of _CHUNK (hence of 8), capped by tile_rows and by the
    # chunk-rounded row count (so small inputs don't over-pad).
    tile_rows = max(_CHUNK, (int(tile_rows) // _CHUNK) * _CHUNK)
    rows_c = -(-rows // _CHUNK) * _CHUNK
    tile_m = min(tile_rows, rows_c)

    total_tiles = -(-rows // tile_m)
    # Two accumulator splits once there is enough work: sharded across
    # TensorCores on megacore chips (v7x); effectively free elsewhere.
    num_splits = 2 if total_tiles >= 16 else 1
    steps = -(-total_tiles // num_splits)
    rows_pad = steps * num_splits * tile_m
    padded = rows_pad * _LANES

    if padded != n:
        # Zeros contribute nothing to any raw-moment sum, so no in-kernel mask
        # is needed; allow_input_fusion below lets XLA fuse this pad/reshape
        # into the pallas_call operands rather than materializing a full copy.
        x_flat = jnp.pad(x_flat, (0, padded - n))
        y_flat = jnp.pad(y_flat, (0, padded - n))
    x2 = x_flat.reshape(rows_pad, _LANES)
    y2 = y_flat.reshape(rows_pad, _LANES)

    kernel = functools.partial(_ccc_moments_kernel, chunk=_CHUNK)

    def in_map(s, i, steps=steps):
        return (s * steps + i, 0)

    bytes_accessed = int(x2.size * x2.dtype.itemsize
                         + y2.size * y2.dtype.itemsize
                         + num_splits * 5 * _SUBLANES * _LANES * 4)
    cost = pl.CostEstimate(flops=10 * n, transcendentals=0,
                           bytes_accessed=bytes_accessed)

    moments = pl.pallas_call(
        kernel,
        out_shape=jax.ShapeDtypeStruct(
            (num_splits, 5, _SUBLANES, _LANES), jnp.float32),
        grid_spec=pltpu.PrefetchScalarGridSpec(
            num_scalar_prefetch=0,
            grid=(num_splits, steps),
            in_specs=[
                pl.BlockSpec((tile_m, _LANES), in_map),
                pl.BlockSpec((tile_m, _LANES), in_map),
            ],
            out_specs=pl.BlockSpec(
                (None, 5, _SUBLANES, _LANES), lambda s, i: (s, 0, 0, 0)),
        ),
        compiler_params=pltpu.CompilerParams(
            dimension_semantics=("parallel", "arbitrary"),
            allow_input_fusion=[True, True],
        ),
        cost_estimate=cost,
    )(x2, y2)

    m = jnp.sum(moments, axis=(0, 2, 3))                  # (5,) raw moments
    return _ccc_from_moments(m[0], m[1], m[2], m[3], m[4],
                             n=n, loss_weight=loss_weight)


def ccc_loss(cls_score, reg_label, *, reduction="mean", loss_weight=1.0,
             tile_rows=2048, small_n_threshold=16384):
    """Pallas implementation of CCCLoss.forward.

    `reduction` is unused by the original forward (the loss is already a
    scalar); kept for signature parity.
    """
    assert cls_score.shape == reg_label.shape
    n = cls_score.size
    assert n >= 2, "std with N-1 denominator needs at least 2 elements"

    x = cls_score.reshape(-1)
    y = reg_label.reshape(-1)

    if n <= small_n_threshold:
        return _ccc_loss_small(x, y, n, float(loss_weight))
    return _ccc_loss_tiled(x, y, n, float(loss_weight), tile_rows)


def _ccc_loss_ref(x, y, loss_weight=1.0):
    """Pure-JAX reference mirroring the PyTorch forward exactly."""
    x = x.astype(jnp.float32)
    y = y.astype(jnp.float32)
    vx = x - jnp.mean(x)
    vy = y - jnp.mean(y)
    rho = jnp.sum(vx * vy) / (
        jnp.sqrt(jnp.sum(vx ** 2)) * jnp.sqrt(jnp.sum(vy ** 2)) + 1e-10
    )
    x_m = jnp.mean(x)
    y_m = jnp.mean(y)
    n = x.size
    x_s = jnp.sqrt(jnp.sum(vx ** 2) / (n - 1))   # torch.std (unbiased)
    y_s = jnp.sqrt(jnp.sum(vy ** 2) / (n - 1))
    ccc = 2 * rho * x_s * y_s / (x_s ** 2 + y_s ** 2 + (x_m - y_m) ** 2 + 1e-10)
    return (1.0 - ccc) * loss_weight


if __name__ == "__main__":
    key = jax.random.PRNGKey(0)
    k1, k2, k3, k4, k5, k6 = jax.random.split(key, 6)

    # 1) Production-like VA regression shape (16, 2) -> small-n fast path.
    cls_score = jax.random.normal(k1, (16, 2), dtype=jnp.float32)
    reg_label = jnp.clip(
        jax.random.normal(k2, (16, 2), dtype=jnp.float32), -1.0, 1.0)
    loss = ccc_loss(cls_score, reg_label, loss_weight=1.0)
    jax.block_until_ready(loss)
    ref = _ccc_loss_ref(cls_score, reg_label, loss_weight=1.0)
    assert jnp.allclose(loss, ref, rtol=1e-5, atol=1e-5), (loss, ref)

    # 1b) bf16 inputs on the small path (kernel does the only f32 cast).
    loss_bf = ccc_loss(cls_score.astype(jnp.bfloat16),
                       reg_label.astype(jnp.bfloat16), loss_weight=1.0)
    jax.block_until_ready(loss_bf)
    ref_bf = _ccc_loss_ref(cls_score.astype(jnp.bfloat16),
                           reg_label.astype(jnp.bfloat16), loss_weight=1.0)
    assert jnp.allclose(loss_bf, ref_bf, rtol=1e-4, atol=1e-4), (loss_bf, ref_bf)

    # 2) Non-multiple-of-128 size above the small-n threshold: tiled path with
    #    a multi-step grid, single split, zero-padded tail and inner fori_loop.
    cls2 = jax.random.normal(k3, (300, 70), dtype=jnp.float32)
    lab2 = jnp.clip(jax.random.normal(k4, (300, 70), dtype=jnp.float32),
                    -1.0, 1.0)
    loss2 = ccc_loss(cls2, lab2, loss_weight=0.5, tile_rows=64)
    jax.block_until_ready(loss2)
    ref2 = _ccc_loss_ref(cls2, lab2, loss_weight=0.5)
    assert jnp.allclose(loss2, ref2, rtol=1e-5, atol=1e-5), (loss2, ref2)

    # 3) Enough tiles to trigger the 2-way "parallel" accumulator split
    #    (sharded across TensorCores on megacore chips, neutral elsewhere).
    cls3 = jax.random.normal(k5, (1030, 130), dtype=jnp.float32)
    lab3 = jnp.clip(jax.random.normal(k6, (1030, 130), dtype=jnp.float32),
                    -1.0, 1.0)
    loss3 = ccc_loss(cls3, lab3, loss_weight=1.0, tile_rows=64)
    jax.block_until_ready(loss3)
    ref3 = _ccc_loss_ref(cls3, lab3, loss_weight=1.0)
    assert jnp.allclose(loss3, ref3, rtol=1e-5, atol=1e-5), (loss3, ref3)

    print("KERNEL_OK")
</pallas_src>

<mosaic_0001>
module attributes {stable_mosaic.version = 11 : i64} {
  func.func @_ccc_small_kernel(%arg0: i32, %arg1: memref<1x32xf32, #tpu.memory_space<vmem>>, %arg2: memref<1x32xf32, #tpu.memory_space<vmem>>, %arg3: memref<1x1xf32, #tpu.memory_space<smem>>) attributes {dimension_semantics = [#tpu.dimension_semantics<arbitrary>], iteration_bounds = array<i64: 1>, scalar_prefetch = 0 : i64, scratch_operands = 0 : i64, tpu.core_type = #tpu.core_type<tc>, window_params = [{pipeline_mode = #tpu.pipeline_mode<synchronous>, transform_indices = @transform_0, window_bounds = array<i64: 1, 32>}, {pipeline_mode = #tpu.pipeline_mode<synchronous>, transform_indices = @transform_1, window_bounds = array<i64: 1, 32>}, {transform_indices = @transform_2, window_bounds = array<i64: 1, 1>}]} {
    %c0 = arith.constant 0 : index
    %c0_0 = arith.constant 0 : index
    %0 = vector.load %arg1[%c0, %c0_0] : memref<1x32xf32, #tpu.memory_space<vmem>>, vector<1x32xf32>
    %c0_1 = arith.constant 0 : index
    %c0_2 = arith.constant 0 : index
    %1 = vector.load %arg2[%c0_1, %c0_2] : memref<1x32xf32, #tpu.memory_space<vmem>>, vector<1x32xf32>
    %2 = vector.shape_cast %0 : vector<1x32xf32> to vector<1x1x32xf32>
    %cst = arith.constant dense<0.000000e+00> : vector<1xf32>
    %3 = vector.multi_reduction <add>, %2, %cst [1, 2] : vector<1x1x32xf32> to vector<1xf32>
    %4 = vector.shape_cast %3 : vector<1xf32> to vector<1x1x1xf32>
    %5 = vector.extract %4[0, 0, 0] : f32 from vector<1x1x1xf32>
    %6 = vector.shape_cast %1 : vector<1x32xf32> to vector<1x1x32xf32>
    %cst_3 = arith.constant dense<0.000000e+00> : vector<1xf32>
    %7 = vector.multi_reduction <add>, %6, %cst_3 [1, 2] : vector<1x1x32xf32> to vector<1xf32>
    %8 = vector.shape_cast %7 : vector<1xf32> to vector<1x1x1xf32>
    %9 = vector.extract %8[0, 0, 0] : f32 from vector<1x1x1xf32>
    %10 = arith.mulf %0, %0 : vector<1x32xf32>
    %11 = vector.shape_cast %10 : vector<1x32xf32> to vector<1x1x32xf32>
    %cst_4 = arith.constant dense<0.000000e+00> : vector<1xf32>
    %12 = vector.multi_reduction <add>, %11, %cst_4 [1, 2] : vector<1x1x32xf32> to vector<1xf32>
    %13 = vector.shape_cast %12 : vector<1xf32> to vector<1x1x1xf32>
    %14 = vector.extract %13[0, 0, 0] : f32 from vector<1x1x1xf32>
    %15 = arith.mulf %1, %1 : vector<1x32xf32>
    %16 = vector.shape_cast %15 : vector<1x32xf32> to vector<1x1x32xf32>
    %cst_5 = arith.constant dense<0.000000e+00> : vector<1xf32>
    %17 = vector.multi_reduction <add>, %16, %cst_5 [1, 2] : vector<1x1x32xf32> to vector<1xf32>
    %18 = vector.shape_cast %17 : vector<1xf32> to vector<1x1x1xf32>
    %19 = vector.extract %18[0, 0, 0] : f32 from vector<1x1x1xf32>
    %20 = arith.mulf %0, %1 : vector<1x32xf32>
    %21 = vector.shape_cast %20 : vector<1x32xf32> to vector<1x1x32xf32>
    %cst_6 = arith.constant dense<0.000000e+00> : vector<1xf32>
    %22 = vector.multi_reduction <add>, %21, %cst_6 [1, 2] : vector<1x1x32xf32> to vector<1xf32>
    %23 = vector.shape_cast %22 : vector<1xf32> to vector<1x1x1xf32>
    %24 = vector.extract %23[0, 0, 0] : f32 from vector<1x1x1xf32>
    %cst_7 = arith.constant 3.125000e-02 : f32
    %25 = arith.mulf %5, %cst_7 : f32
    %cst_8 = arith.constant 3.125000e-02 : f32
    %26 = arith.mulf %9, %cst_8 : f32
    %27 = arith.mulf %5, %25 : f32
    %28 = arith.subf %14, %27 : f32
    %cst_9 = arith.constant 0.000000e+00 : f32
    %29 = arith.maximumf %28, %cst_9 : f32
    %30 = arith.mulf %9, %26 : f32
    %31 = arith.subf %19, %30 : f32
    %cst_10 = arith.constant 0.000000e+00 : f32
    %32 = arith.maximumf %31, %cst_10 : f32
    %33 = arith.mulf %5, %26 : f32
    %34 = arith.subf %24, %33 : f32
    %35 = math.sqrt %29 : f32
    %36 = math.sqrt %32 : f32
    %37 = arith.mulf %35, %36 : f32
    %cst_11 = arith.constant 1.000000e-10 : f32
    %38 = arith.addf %37, %cst_11 : f32
    %39 = arith.divf %34, %38 : f32
    %cst_12 = arith.constant 0.0322580636 : f32
    %40 = arith.mulf %29, %cst_12 : f32
    %41 = math.sqrt %40 : f32
    %cst_13 = arith.constant 0.0322580636 : f32
    %42 = arith.mulf %32, %cst_13 : f32
    %43 = math.sqrt %42 : f32
    %cst_14 = arith.constant 2.000000e+00 : f32
    %44 = arith.mulf %cst_14, %39 : f32
    %45 = arith.mulf %44, %41 : f32
    %46 = arith.mulf %45, %43 : f32
    %47 = arith.mulf %41, %41 : f32
    %48 = arith.mulf %43, %43 : f32
    %49 = arith.addf %47, %48 : f32
    %50 = arith.subf %25, %26 : f32
    %51 = arith.mulf %50, %50 : f32
    %52 = arith.addf %49, %51 : f32
    %cst_15 = arith.constant 1.000000e-10 : f32
    %53 = arith.addf %52, %cst_15 : f32
    %54 = arith.divf %46, %53 : f32
    %cst_16 = arith.constant 1.000000e+00 : f32
    %55 = arith.subf %cst_16, %54 : f32
    %cst_17 = arith.constant 1.000000e+00 : f32
    %56 = arith.mulf %55, %cst_17 : f32
    %c0_18 = arith.constant 0 : index
    %c0_19 = arith.constant 0 : index
    %57 = memref.load %arg3[%c0_18, %c0_19] : memref<1x1xf32, #tpu.memory_space<smem>>
    memref.store %56, %arg3[%c0_18, %c0_19] : memref<1x1xf32, #tpu.memory_space<smem>>
    return
  }
  func.func @transform_0(%arg0: i32) -> (i32, i32) {
    %c0_i32 = arith.constant 0 : i32
    %c0_i32_0 = arith.constant 0 : i32
    %c0_i32_1 = arith.constant 0 : i32
    return %c0_i32, %c0_i32_0 : i32, i32
  }
  func.func @transform_1(%arg0: i32) -> (i32, i32) {
    %c0_i32 = arith.constant 0 : i32
    %c0_i32_0 = arith.constant 0 : i32
    %c0_i32_1 = arith.constant 0 : i32
    return %c0_i32, %c0_i32_0 : i32, i32
  }
  func.func @transform_2(%arg0: i32) -> (i32, i32) {
    %c0_i32 = arith.constant 0 : i32
    %c0_i32_0 = arith.constant 0 : i32
    %c0_i32_1 = arith.constant 0 : i32
    return %c0_i32, %c0_i32_0 : i32, i32
  }
}

</mosaic_0001>

<llo_original>
// kernel: tpu_custom_call.1
$region0: #{tpu_custom_call.1}
  #allocation0 [shape = 'u32[]', space=smem, size = 0x4, offset = 0x4, fixed_abs, tag = 'smem constant byte address 0x4 - core index']
  #allocation1 [shape = 'u32[144,128]{1,0:T(1,128)}', space=vmem, size = 0x12000, scoped, tag = 'internal scratch']
  %s0 = inlined_call_operand.hbm [shape: f32[1,32], index: 0, kind: input, shape index: {}]
  %s1 = inlined_call_operand.vmem [shape: f32[1,32], index: 1, kind: input, shape index: {}]
  %s2 = inlined_call_operand.hbm [shape: f32[1,1], index: 2, kind: output, shape index: {}]
  %s3 = sld [smem:[#allocation0]]
  $region22: #{tpu_custom_call.1} parent=0
    _
  %s5 = ssub.s32 1, %s3
  %s6 = scalar_select 0, %s5, %s3
  $region1: #{tpu_custom_call.1} parent=0
    #allocation2 [shape = 'u8[512]{0}', space=vmem, size = 0x400, scoped, tag = 'input window, operand 0, single buffered']
    #allocation3 [shape = 's32[1]{0}', space=sflag, size = 0x4, scoped, tag = 'scoped memory for tpu_custom_call.1']
    #allocation4 [shape = 's32[1]{0}', space=sflag, size = 0x4, scoped, tag = 'scoped memory for tpu_custom_call.1']
    #allocation5 [shape = 'u8[512]{0}', space=smem, size = 0x200, scoped, tag = 'output window, operand 0, single buffered']
    %7 = vsyncpa [#allocation3], 0
    %8 = vsyncpa [#allocation4], 0
    // Predicated region
    $region2: #{tpu_custom_call.1} parent=1 // pred_check
      _
    $region3: #{tpu_custom_call.1} parent=1 // pred_check_branch
      %10 = sbr.rel (0) target = $region5
    $region4: #{tpu_custom_call.1} parent=1 // pred_region
      %s12 = ssub.s32 16, 16
      %13 = vsyncadd [#allocation3], %s12
      %s15 = sshll.u32 [#allocation2], 4
      %s16 = int_to_ptr.vmem [resolvable:$true] %s15
      %18 = dma.hbm_to_vmem [thread:$0]  %s0, 16, %s16, [#allocation3]
    $region5: #{tpu_custom_call.1} parent=1 // pred_fallthru
      _
    // Predicated region
    $region6: #{tpu_custom_call.1} parent=1 // pred_check
      _
    $region7: #{tpu_custom_call.1} parent=1 // pred_check_branch
      %20 = sbr.rel (0) target = $region9
    $region8: #{tpu_custom_call.1} parent=1 // pred_region
      _
    $region9: #{tpu_custom_call.1} parent=1 // pred_fallthru
      _
    // Predicated region
    $region10: #{tpu_custom_call.1} parent=1 // pred_check
      _
    $region11: #{tpu_custom_call.1} parent=1 // pred_check_branch
      %22 = sbr.rel (0) target = $region13
    $region12: #{tpu_custom_call.1} parent=1 // pred_region
      %23 = dma.done [#allocation3], 16
    $region13: #{tpu_custom_call.1} parent=1 // pred_fallthru
      _
    %v24 = vld [vmem:[#allocation2] sm:$0x1]
    %v25 = vld [vmem:[%s1] sm:$0x1]
    %vm26 = vcmask 253952
    %v27 = vsel %vm26, %v24, 0.0
    %28 = vadd.xlane.f32.xlu0 %v27
    %v29 = vpop.xlane.xlu0 %28
    %v30 = vrot.slane %v29, 4
    %v31 = vadd.f32 %v29, %v30
    %v32 = vrot.slane %v31, 2
    %v33 = vadd.f32 %v31, %v32
    %v34 = vrot.slane %v33, 1
    %v35 = vadd.f32 %v33, %v34
    %s36 = vtos %v35
    %v37 = vsel %vm26, %v25, 0.0
    %38 = vadd.xlane.f32.xlu0 %v37
    %v39 = vpop.xlane.xlu0 %38
    %v40 = vrot.slane %v39, 4
    %v41 = vadd.f32 %v39, %v40
    %v42 = vrot.slane %v41, 2
    %v43 = vadd.f32 %v41, %v42
    %v44 = vrot.slane %v43, 1
    %v45 = vadd.f32 %v43, %v44
    %s46 = vtos %v45
    %v47 = vmul.f32 %v24, %v24
    %v48 = vsel %vm26, %v47, 0.0
    %49 = vadd.xlane.f32.xlu0 %v48
    %v50 = vpop.xlane.xlu0 %49
    %v51 = vrot.slane %v50, 4
    %v52 = vadd.f32 %v50, %v51
    %v53 = vrot.slane %v52, 2
    %v54 = vadd.f32 %v52, %v53
    %v55 = vrot.slane %v54, 1
    %v56 = vadd.f32 %v54, %v55
    %s57 = vtos %v56
    %v58 = vmul.f32 %v25, %v25
    %v59 = vsel %vm26, %v58, 0.0
    %60 = vadd.xlane.f32.xlu0 %v59
    %v61 = vpop.xlane.xlu0 %60
    %v62 = vrot.slane %v61, 4
    %v63 = vadd.f32 %v61, %v62
    %v64 = vrot.slane %v63, 2
    %v65 = vadd.f32 %v63, %v64
    %v66 = vrot.slane %v65, 1
    %v67 = vadd.f32 %v65, %v66
    %s68 = vtos %v67
    %v69 = vmul.f32 %v24, %v25
    %v70 = vsel %vm26, %v69, 0.0
    %71 = vadd.xlane.f32.xlu0 %v70
    %v72 = vpop.xlane.xlu0 %71
    %v73 = vrot.slane %v72, 4
    %v74 = vadd.f32 %v72, %v73
    %v75 = vrot.slane %v74, 2
    %v76 = vadd.f32 %v74, %v75
    %v77 = vrot.slane %v76, 1
    %v78 = vadd.f32 %v76, %v77
    %s79 = vtos %v78
    %s80 = smul.f32 %s36, 0.03125
    %s81 = smul.f32 %s46, 0.03125
    %s82 = smul.f32 %s36, %s80
    %s83 = ssub.f32 %s57, %s82
    %s84 = smax.f32 %s83, 0.0
    %s85 = smul.f32 %s46, %s81
    %s86 = ssub.f32 %s68, %s85
    %s87 = smax.f32 %s86, 0.0
    %s88 = smul.f32 %s36, %s81
    %s89 = ssub.f32 %s79, %s88
    %v90 = vstv %s84
    %v91 = vrsqrt.pop %v90
    %v92 = vmul.f32 %v90, %v91
    %vm93 = vcmp.eq.f32.partialorder %v90, inf
    %v94 = vsel %vm93, %v90, %v92
    %vm95 = vcmp.eq.f32.partialorder %v90, 0.0
    %v96 = vand.u32 %v90, 2147483648
    %v97 = vsel %vm95, %v96, %v94
    %s98 = vtos %v97
    %v99 = vstv %s87
    %v100 = vrsqrt.pop %v99
    %v101 = vmul.f32 %v99, %v100
    %vm102 = vcmp.eq.f32.partialorder %v99, inf
    %v103 = vsel %vm102, %v99, %v101
    %vm104 = vcmp.eq.f32.partialorder %v99, 0.0
    %v105 = vand.u32 %v99, 2147483648
    %v106 = vsel %vm104, %v105, %v103
    %s107 = vtos %v106
    %s108 = smul.f32 %s98, %s107
    %s109 = sadd.f32 %s108, 1e-10
    %v110 = vstv %s109
    %v111 = vrcp.pop %v110
    %s112 = vtos %v111
    %s113 = smul.f32 %s89, %s112
    %s114 = smul.f32 %s84, 0.032258064
    %v115 = vstv %s114
    %v116 = vrsqrt.pop %v115
    %v117 = vmul.f32 %v115, %v116
    %vm118 = vcmp.eq.f32.partialorder %v115, inf
    %v119 = vsel %vm118, %v115, %v117
    %vm120 = vcmp.eq.f32.partialorder %v115, 0.0
    %v121 = vand.u32 %v115, 2147483648
    %v122 = vsel %vm120, %v121, %v119
    %s123 = vtos %v122
    %s124 = smul.f32 %s87, 0.032258064
    %v125 = vstv %s124
    %v126 = vrsqrt.pop %v125
    %v127 = vmul.f32 %v125, %v126
    %vm128 = vcmp.eq.f32.partialorder %v125, inf
    %v129 = vsel %vm128, %v125, %v127
    %vm130 = vcmp.eq.f32.partialorder %v125, 0.0
    %v131 = vand.u32 %v125, 2147483648
    %v132 = vsel %vm130, %v131, %v129
    %s133 = vtos %v132
    %s134 = smul.f32 %s113, 2.0
    %s135 = smul.f32 %s134, %s123
    %s136 = smul.f32 %s135, %s133
    %s137 = smul.f32 %s123, %s123
    %s138 = smul.f32 %s133, %s133
    %s139 = sadd.f32 %s137, %s138
    %s140 = ssub.f32 %s80, %s81
    %s141 = smul.f32 %s140, %s140
    %s142 = sadd.f32 %s139, %s141
    %s143 = sadd.f32 %s142, 1e-10
    %v144 = vstv %s143
    %v145 = vrcp.pop %v144
    %s146 = vtos %v145
    %s147 = smul.f32 %s136, %s146
    %s148 = ssub.f32 1.0, %s147
    %s149 = scalar_lea.smem [#allocation5], 0
    %150 = sst [smem:[%s149]] %s148
    // Predicated region
    $region14: #{tpu_custom_call.1} parent=1 // pred_check
      _
    $region15: #{tpu_custom_call.1} parent=1 // pred_check_branch
      %152 = sbr.rel (0) target = $region17
    $region16: #{tpu_custom_call.1} parent=1 // pred_region
      %s154 = ssub.s32 16, 16
      %155 = vsyncadd [#allocation4], %s154
      %158 = dma.smem_to_hbm [#allocation5], 16, %s2, [#allocation4]
    $region17: #{tpu_custom_call.1} parent=1 // pred_fallthru
      _
    // Predicated region
    $region18: #{tpu_custom_call.1} parent=1 // pred_check
      _
    $region19: #{tpu_custom_call.1} parent=1 // pred_check_branch
      %160 = sbr.rel (0) target = $region21
    $region20: #{tpu_custom_call.1} parent=1 // pred_region
      %161 = dma.done [#allocation4], 16
    $region21: #{tpu_custom_call.1} parent=1 // pred_fallthru
      _
    %162 = sfence
    %163 = vsyncpa [#allocation3], 1
    %164 = vsyncpa [#allocation4], 1

</llo_original>
